<compile_context>
chip_gen: v5e
topology: v5e:2x2
jax: 0.10.0
libtpu: 0.0.40
codegen_flags: <defaults>
</compile_context>

<pallas_src>
import functools

import jax
import jax.numpy as jnp
from jax import lax
from jax.experimental import pallas as pl
from jax.experimental.pallas import tpu as pltpu


def _nt_xent_kernel(q_ref, p_ref, k_ref, o_ref, m_scr, l_scr, *,
                    inv_temp, row_block, col_block, roll_shift, mm_dtype):
    i = pl.program_id(0)          # row block      (parallel)
    j = pl.program_id(1)          # column block   (reduction, arbitrary)
    nj = pl.num_programs(1)

    @pl.when(j == 0)
    def _init():
        m_scr[...] = jnp.full(m_scr.shape, -jnp.inf, jnp.float32)
        l_scr[...] = jnp.zeros(l_scr.shape, jnp.float32)

    q = q_ref[...].astype(jnp.float32)                                 # (tm, C)
    k = k_ref[...].astype(jnp.float32)                                 # (tn, C)

    # Per-row inverse norms on the EUP (rsqrt), clamped at sqrt(1e-8); 1/T is folded
    # into the q-row scale so no N x N scaling op is needed.
    # NOTE: PyTorch CosineSimilarity clamps ||a||*||b|| at 1e-8; the per-row clamp is
    # identical for non-degenerate rows (differs only for near-zero-norm rows).
    q_scale = lax.rsqrt(jnp.maximum(jnp.sum(q * q, axis=-1, keepdims=True),
                                    jnp.float32(1e-8))) * jnp.float32(inv_temp)
    k_scale = lax.rsqrt(jnp.maximum(jnp.sum(k * k, axis=-1, keepdims=True),
                                    jnp.float32(1e-8)))
    q_hat = q * q_scale                                                # (tm, C)
    k_hat = k * k_scale                                                # (tn, C)

    # (tm, tn) similarity tile on the MXU; contraction over the last dim of both
    # operands (transpose folded into the operand load, not materialized).
    s = lax.dot_general(q_hat.astype(mm_dtype), k_hat.astype(mm_dtype),
                        (((1,), (1,)), ((), ())),
                        preferred_element_type=jnp.float32)            # (tm, tn)

    # Mask self-similarity: global column index == global row index.
    col = lax.broadcasted_iota(jnp.int32, (row_block, col_block), 1)
    row = lax.broadcasted_iota(jnp.int32, (row_block, 1), 0)
    diag = col == row + (i * row_block - j * col_block)
    s = jnp.where(diag, jnp.float32(-1e30), s)

    # Online logsumexp update over column blocks.
    m_prev = m_scr[...]
    m_new = jnp.maximum(m_prev, jnp.max(s, axis=-1, keepdims=True))
    alpha = jnp.exp(m_prev - m_new)
    l_scr[...] = alpha * l_scr[...] + jnp.sum(jnp.exp(s - m_new), axis=-1,
                                              keepdims=True)
    m_scr[...] = m_new

    @pl.when(j == nj - 1)
    def _finalize():
        # Positive logit per row: cos(z[a], z[partner(a)]) / T computed as a row-wise
        # dot with the partner block (1/T is already folded into q_hat).
        p = p_ref[...].astype(jnp.float32)
        p_hat = p * lax.rsqrt(jnp.maximum(jnp.sum(p * p, axis=-1, keepdims=True),
                                          jnp.float32(1e-8)))
        if roll_shift:  # static; only in the single-row-block fallback (tm == N)
            p_hat = pltpu.roll(p_hat, shift=roll_shift, axis=0)
        pos = jnp.sum(q_hat * p_hat, axis=-1, keepdims=True)           # (tm, 1)
        lse = m_scr[...] + jnp.log(l_scr[...])                         # (tm, 1)
        # Per-row-block partial loss, splatted into this block's private lane-dense
        # (8, 128) output tile (unmasked stores; disjoint per parallel row block).
        o_ref[...] = jnp.zeros(o_ref.shape, jnp.float32) + jnp.sum(lse - pos)


def _pick_block(n, cap=256):
    """Largest multiple-of-8 divisor of n (capped), or None."""
    for t in (256, 128, 64, 32, 16, 8):
        if t <= cap and n % t == 0:
            return t
    return None


def nt_xent_loss(z_i, z_j, temperature, *, row_block=None, col_block=None):
    """z_i, z_j: [B, C]; returns scalar NT-Xent loss (sum of CE / N)."""
    # TODO(synk): optional ProjectionHead (projection_head=True) is not implemented.
    assert z_i.ndim == 2 and z_i.shape == z_j.shape
    B, C = z_i.shape
    N = 2 * B

    # Concatenate once in the native dtype (no extra f32 HBM copy). Elementwise math is
    # f32 inside the kernel; the MXU runs bf16 when inputs are bf16.
    z = jnp.concatenate([z_i, z_j], axis=0)

    # Row blocks must tile each half evenly so a block's partner rows are exactly one
    # other block; otherwise fall back to a single row block over all of z (partner
    # rows then come from a pltpu.roll by B).
    tm = row_block if row_block is not None else _pick_block(B)
    if tm is None or tm != N and (B % tm or tm % 8):
        tm = N
    tn = col_block if col_block is not None else _pick_block(N)
    if tn is None or tn != N and (N % tn or tn % 8):
        tn = N

    num_i = N // tm
    num_j = N // tn
    pb_off = (B // tm) % num_i        # partner block offset (0 only in tm == N fallback)
    roll_shift = B % tm               # within-block partner offset (tm == N fallback)
    mm_dtype = jnp.bfloat16 if z.dtype == jnp.bfloat16 else jnp.float32

    kernel = functools.partial(
        _nt_xent_kernel,
        inv_temp=1.0 / float(temperature),
        row_block=tm, col_block=tn, roll_shift=roll_shift, mm_dtype=mm_dtype,
    )

    isize = z.dtype.itemsize
    parts = pl.pallas_call(
        kernel,
        out_shape=jax.ShapeDtypeStruct((num_i * 8, 128), jnp.float32),
        grid=(num_i, num_j),
        in_specs=[
            pl.BlockSpec((tm, C), lambda i, j: (i, 0)),                      # q rows
            pl.BlockSpec((tm, C), lambda i, j: ((i + pb_off) % num_i, 0)),   # partner rows
            pl.BlockSpec((tn, C), lambda i, j: (j, 0)),                      # "column" rows
        ],
        out_specs=pl.BlockSpec((8, 128), lambda i, j: (i, 0)),
        scratch_shapes=[
            pltpu.VMEM((tm, 1), jnp.float32),   # running row max
            pltpu.VMEM((tm, 1), jnp.float32),   # running row sum(exp)
        ],
        compiler_params=pltpu.CompilerParams(
            dimension_semantics=("parallel", "arbitrary"),
            vmem_limit_bytes=48 * 1024 * 1024,   # safe on v5e/v6e (128 MiB) and v7x (64 MiB)
        ),
        cost_estimate=pl.CostEstimate(
            flops=2 * N * N * C + 8 * N * N,
            transcendentals=N * N + 4 * N,
            bytes_accessed=(num_i + 2) * N * C * isize + num_i * 8 * 128 * 4,
        ),
    )(z, z, z)

    # Tiny reduction over per-row-block partials (one value per (8,128) tile).
    return jnp.sum(parts[::8, 0]) / N


def _nt_xent_ref(z_i, z_j, temperature):
    """Pure-JAX reference mirroring the PyTorch forward."""
    z = jnp.concatenate([z_i, z_j], axis=0).astype(jnp.float32)
    N = z.shape[0]
    B = N // 2
    norms = jnp.sqrt(jnp.sum(z * z, axis=-1, keepdims=True))
    dots = jnp.matmul(z, z.T, precision=lax.Precision.HIGHEST)
    sim = dots / jnp.maximum(norms * norms.T, 1e-8) / temperature
    pos = jnp.concatenate(
        [jnp.diagonal(sim, offset=B), jnp.diagonal(sim, offset=-B)], axis=0)
    masked = jnp.where(jnp.eye(N, dtype=bool), -1e30, sim)
    m = jnp.max(masked, axis=-1, keepdims=True)
    lse = m[:, 0] + jnp.log(jnp.sum(jnp.exp(masked - m), axis=-1))
    return jnp.sum(lse - pos) / N


if __name__ == "__main__":
    temperature = 0.5
    key = jax.random.PRNGKey(0)
    k1, k2 = jax.random.split(key)

    # Small shapes consistent with the module (batch_size x C projections).
    z_i = jax.random.normal(k1, (4, 32), dtype=jnp.float32)
    z_j = jax.random.normal(k2, (4, 32), dtype=jnp.float32)
    loss = nt_xent_loss(z_i, z_j, temperature)
    jax.block_until_ready(loss)
    ref = _nt_xent_ref(z_i, z_j, temperature)
    assert jnp.allclose(loss, ref, rtol=1e-4, atol=1e-4), (loss, ref)

    # Also exercise the tiled path (multiple row/column blocks, online logsumexp,
    # partner-block positives) at a modest size.
    k3, k4 = jax.random.split(k2)
    z_i2 = jax.random.normal(k3, (64, 128), dtype=jnp.float32)
    z_j2 = jax.random.normal(k4, (64, 128), dtype=jnp.float32)
    loss2 = nt_xent_loss(z_i2, z_j2, temperature, row_block=32, col_block=32)
    jax.block_until_ready(loss2)
    ref2 = _nt_xent_ref(z_i2, z_j2, temperature)
    assert jnp.allclose(loss2, ref2, rtol=1e-4, atol=1e-4), (loss2, ref2)

    print("KERNEL_OK")
</pallas_src>

<mosaic_0001>
module attributes {stable_mosaic.version = 11 : i64} {
  func.func @_nt_xent_kernel(%arg0: i32, %arg1: i32, %arg2: memref<8x32xf32, #tpu.memory_space<vmem>>, %arg3: memref<8x32xf32, #tpu.memory_space<vmem>>, %arg4: memref<8x32xf32, #tpu.memory_space<vmem>>, %arg5: memref<8x128xf32, #tpu.memory_space<vmem>>, %arg6: memref<8x1xf32, #tpu.memory_space<vmem>>, %arg7: memref<8x1xf32, #tpu.memory_space<vmem>>) attributes {dimension_semantics = [#tpu.dimension_semantics<parallel>, #tpu.dimension_semantics<arbitrary>], iteration_bounds = array<i64: 1, 1>, scalar_prefetch = 0 : i64, scratch_operands = 2 : i64, tpu.core_type = #tpu.core_type<tc>, window_params = [{transform_indices = @transform_0, window_bounds = array<i64: 8, 32>}, {transform_indices = @transform_1, window_bounds = array<i64: 8, 32>}, {transform_indices = @transform_2, window_bounds = array<i64: 8, 32>}, {transform_indices = @transform_3, window_bounds = array<i64: 8, 128>}]} {
    %c0_i32 = arith.constant 0 : i32
    %0 = arith.cmpi eq, %arg1, %c0_i32 : i32
    %1 = arith.extui %0 : i1 to i32
    %c0_i32_0 = arith.constant 0 : i32
    %2 = arith.cmpi ne, %1, %c0_i32_0 : i32
    scf.if %2 {
      %cst_23 = arith.constant 0xFF800000 : f32
      %54 = vector.broadcast %cst_23 : f32 to vector<8x1xf32>
      %c0_24 = arith.constant 0 : index
      %c0_25 = arith.constant 0 : index
      %55 = vector.load %arg6[%c0_24, %c0_25] : memref<8x1xf32, #tpu.memory_space<vmem>>, vector<8x1xf32>
      tpu.vector_store %arg6[%c0_24, %c0_25], %54 {strides = array<i32>} : memref<8x1xf32, #tpu.memory_space<vmem>>, vector<8x1xf32>,
      %cst_26 = arith.constant 0.000000e+00 : f32
      %56 = vector.broadcast %cst_26 : f32 to vector<8x1xf32>
      %c0_27 = arith.constant 0 : index
      %c0_28 = arith.constant 0 : index
      %57 = vector.load %arg7[%c0_27, %c0_28] : memref<8x1xf32, #tpu.memory_space<vmem>>, vector<8x1xf32>
      tpu.vector_store %arg7[%c0_27, %c0_28], %56 {strides = array<i32>} : memref<8x1xf32, #tpu.memory_space<vmem>>, vector<8x1xf32>,
    } else {
    }
    %c0 = arith.constant 0 : index
    %c0_1 = arith.constant 0 : index
    %3 = vector.load %arg2[%c0, %c0_1] : memref<8x32xf32, #tpu.memory_space<vmem>>, vector<8x32xf32>
    %c0_2 = arith.constant 0 : index
    %c0_3 = arith.constant 0 : index
    %4 = vector.load %arg4[%c0_2, %c0_3] : memref<8x32xf32, #tpu.memory_space<vmem>>, vector<8x32xf32>
    %5 = arith.mulf %3, %3 : vector<8x32xf32>
    %cst = arith.constant dense<0.000000e+00> : vector<8xf32>
    %6 = vector.multi_reduction <add>, %5, %cst [1] : vector<8x32xf32> to vector<8xf32>
    %7 = vector.shape_cast %6 : vector<8xf32> to vector<8x1xf32>
    %cst_4 = arith.constant 9.99999993E-9 : f32
    %8 = vector.broadcast %cst_4 : f32 to vector<8x1xf32>
    %9 = arith.maximumf %7, %8 : vector<8x1xf32>
    %10 = math.rsqrt %9 : vector<8x1xf32>
    %cst_5 = arith.constant 2.000000e+00 : f32
    %11 = vector.broadcast %cst_5 : f32 to vector<8x1xf32>
    %12 = arith.mulf %10, %11 : vector<8x1xf32>
    %13 = arith.mulf %4, %4 : vector<8x32xf32>
    %cst_6 = arith.constant dense<0.000000e+00> : vector<8xf32>
    %14 = vector.multi_reduction <add>, %13, %cst_6 [1] : vector<8x32xf32> to vector<8xf32>
    %15 = vector.shape_cast %14 : vector<8xf32> to vector<8x1xf32>
    %cst_7 = arith.constant 9.99999993E-9 : f32
    %16 = vector.broadcast %cst_7 : f32 to vector<8x1xf32>
    %17 = arith.maximumf %15, %16 : vector<8x1xf32>
    %18 = math.rsqrt %17 : vector<8x1xf32>
    %19 = vector.broadcast %12 : vector<8x1xf32> to vector<8x32xf32>
    %20 = arith.mulf %3, %19 : vector<8x32xf32>
    %21 = vector.broadcast %18 : vector<8x1xf32> to vector<8x32xf32>
    %22 = arith.mulf %4, %21 : vector<8x32xf32>
    %cst_8 = arith.constant dense<0.000000e+00> : vector<8x8xf32>
    %23 = tpu.matmul %20, %22, %cst_8 {dimension_numbers = #tpu.dot_dimension_numbers<[1], [1], [0], [0], [0, 0, 1, 0], [], []>} : vector<8x32xf32>, vector<8x32xf32>, vector<8x8xf32> -> vector<8x8xf32>
    %24 = tpu.iota {dimensions = array<i32: 1>} : vector<8x8xi32>
    %25 = tpu.iota {dimensions = array<i32: 0>} : vector<8x1xi32>
    %c8_i32 = arith.constant 8 : i32
    %26 = arith.muli %arg0, %c8_i32 : i32
    %c8_i32_9 = arith.constant 8 : i32
    %27 = arith.muli %arg1, %c8_i32_9 : i32
    %28 = arith.subi %26, %27 : i32
    %29 = vector.broadcast %28 : i32 to vector<8x1xi32>
    %30 = arith.addi %25, %29 : vector<8x1xi32>
    %31 = vector.broadcast %30 : vector<8x1xi32> to vector<8x8xi32>
    %32 = arith.cmpi eq, %24, %31 : vector<8x8xi32>
    %cst_10 = arith.constant -1.000000e+30 : f32
    %33 = vector.broadcast %cst_10 : f32 to vector<8x8xf32>
    %34 = arith.select %32, %33, %23 : vector<8x8xi1>, vector<8x8xf32>
    %c0_11 = arith.constant 0 : index
    %c0_12 = arith.constant 0 : index
    %35 = vector.load %arg6[%c0_11, %c0_12] : memref<8x1xf32, #tpu.memory_space<vmem>>, vector<8x1xf32>
    %cst_13 = arith.constant dense<0xFF800000> : vector<8xf32>
    %36 = vector.multi_reduction <maximumf>, %34, %cst_13 [1] : vector<8x8xf32> to vector<8xf32>
    %37 = vector.shape_cast %36 : vector<8xf32> to vector<8x1xf32>
    %38 = arith.maximumf %35, %37 : vector<8x1xf32>
    %39 = arith.subf %35, %38 : vector<8x1xf32>
    %40 = math.exp %39 : vector<8x1xf32>
    %c0_14 = arith.constant 0 : index
    %c0_15 = arith.constant 0 : index
    %41 = vector.load %arg7[%c0_14, %c0_15] : memref<8x1xf32, #tpu.memory_space<vmem>>, vector<8x1xf32>
    %42 = arith.mulf %40, %41 : vector<8x1xf32>
    %43 = vector.broadcast %38 : vector<8x1xf32> to vector<8x8xf32>
    %44 = arith.subf %34, %43 : vector<8x8xf32>
    %45 = math.exp %44 : vector<8x8xf32>
    %cst_16 = arith.constant dense<0.000000e+00> : vector<8xf32>
    %46 = vector.multi_reduction <add>, %45, %cst_16 [1] : vector<8x8xf32> to vector<8xf32>
    %47 = vector.shape_cast %46 : vector<8xf32> to vector<8x1xf32>
    %48 = arith.addf %42, %47 : vector<8x1xf32>
    %c0_17 = arith.constant 0 : index
    %c0_18 = arith.constant 0 : index
    %49 = vector.load %arg7[%c0_17, %c0_18] : memref<8x1xf32, #tpu.memory_space<vmem>>, vector<8x1xf32>
    tpu.vector_store %arg7[%c0_17, %c0_18], %48 {strides = array<i32>} : memref<8x1xf32, #tpu.memory_space<vmem>>, vector<8x1xf32>,
    %c0_19 = arith.constant 0 : index
    %c0_20 = arith.constant 0 : index
    %50 = vector.load %arg6[%c0_19, %c0_20] : memref<8x1xf32, #tpu.memory_space<vmem>>, vector<8x1xf32>
    tpu.vector_store %arg6[%c0_19, %c0_20], %38 {strides = array<i32>} : memref<8x1xf32, #tpu.memory_space<vmem>>, vector<8x1xf32>,
    %c0_i32_21 = arith.constant 0 : i32
    %51 = arith.cmpi eq, %arg1, %c0_i32_21 : i32
    %52 = arith.extui %51 : i1 to i32
    %c0_i32_22 = arith.constant 0 : i32
    %53 = arith.cmpi ne, %52, %c0_i32_22 : i32
    scf.if %53 {
      %c0_23 = arith.constant 0 : index
      %c0_24 = arith.constant 0 : index
      %54 = vector.load %arg3[%c0_23, %c0_24] : memref<8x32xf32, #tpu.memory_space<vmem>>, vector<8x32xf32>
      %55 = arith.mulf %54, %54 : vector<8x32xf32>
      %cst_25 = arith.constant dense<0.000000e+00> : vector<8xf32>
      %56 = vector.multi_reduction <add>, %55, %cst_25 [1] : vector<8x32xf32> to vector<8xf32>
      %57 = vector.shape_cast %56 : vector<8xf32> to vector<8x1xf32>
      %cst_26 = arith.constant 9.99999993E-9 : f32
      %58 = vector.broadcast %cst_26 : f32 to vector<8x1xf32>
      %59 = arith.maximumf %57, %58 : vector<8x1xf32>
      %60 = math.rsqrt %59 : vector<8x1xf32>
      %61 = vector.broadcast %60 : vector<8x1xf32> to vector<8x32xf32>
      %62 = arith.mulf %54, %61 : vector<8x32xf32>
      %c4_i32 = arith.constant 4 : i32
      %63 = tpu.dynamic_rotate %62 by %c4_i32 dim 0 : vector<8x32xf32>, i32 -> vector<8x32xf32>
      %64 = arith.mulf %20, %63 : vector<8x32xf32>
      %cst_27 = arith.constant dense<0.000000e+00> : vector<8xf32>
      %65 = vector.multi_reduction <add>, %64, %cst_27 [1] : vector<8x32xf32> to vector<8xf32>
      %66 = vector.shape_cast %65 : vector<8xf32> to vector<8x1xf32>
      %c0_28 = arith.constant 0 : index
      %c0_29 = arith.constant 0 : index
      %67 = vector.load %arg6[%c0_28, %c0_29] : memref<8x1xf32, #tpu.memory_space<vmem>>, vector<8x1xf32>
      %c0_30 = arith.constant 0 : index
      %c0_31 = arith.constant 0 : index
      %68 = vector.load %arg7[%c0_30, %c0_31] : memref<8x1xf32, #tpu.memory_space<vmem>>, vector<8x1xf32>
      %69 = math.log %68 : vector<8x1xf32>
      %70 = arith.addf %67, %69 : vector<8x1xf32>
      %cst_32 = arith.constant 0.000000e+00 : f32
      %71 = vector.broadcast %cst_32 : f32 to vector<8x128xf32>
      %72 = arith.subf %70, %66 : vector<8x1xf32>
      %73 = vector.shape_cast %72 : vector<8x1xf32> to vector<1x8x1xf32>
      %cst_33 = arith.constant dense<0.000000e+00> : vector<1xf32>
      %74 = vector.multi_reduction <add>, %73, %cst_33 [1, 2] : vector<1x8x1xf32> to vector<1xf32>
      %75 = vector.shape_cast %74 : vector<1xf32> to vector<1x1x1xf32>
      %76 = vector.extract %75[0, 0, 0] : f32 from vector<1x1x1xf32>
      %77 = vector.broadcast %76 : f32 to vector<8x128xf32>
      %78 = arith.addf %71, %77 : vector<8x128xf32>
      %c0_34 = arith.constant 0 : index
      %c0_35 = arith.constant 0 : index
      %79 = vector.load %arg5[%c0_34, %c0_35] : memref<8x128xf32, #tpu.memory_space<vmem>>, vector<8x128xf32>
      tpu.vector_store %arg5[%c0_34, %c0_35], %78 {strides = array<i32>} : memref<8x128xf32, #tpu.memory_space<vmem>>, vector<8x128xf32>,
    } else {
    }
    return
  }
  func.func @transform_0(%arg0: i32, %arg1: i32) -> (i32, i32) {
    %c0_i32 = arith.constant 0 : i32
    %c0_i32_0 = arith.constant 0 : i32
    return %arg0, %c0_i32 : i32, i32
  }
  func.func @transform_1(%arg0: i32, %arg1: i32) -> (i32, i32) {
    %c0_i32 = arith.constant 0 : i32
    %0 = arith.addi %arg0, %c0_i32 : i32
    %c1_i32 = arith.constant 1 : i32
    %c0_i32_0 = arith.constant 0 : i32
    %1 = arith.cmpi eq, %c1_i32, %c0_i32_0 : i32
    %c1_i32_1 = arith.constant 1 : i32
    %2 = arith.select %1, %c1_i32_1, %c1_i32 : i32
    %3 = arith.remsi %0, %2 : i32
    %c0_i32_2 = arith.constant 0 : i32
    %4 = arith.cmpi ne, %3, %c0_i32_2 : i32
    %c0_i32_3 = arith.constant 0 : i32
    %5 = arith.cmpi slt, %3, %c0_i32_3 : i32
    %c0_i32_4 = arith.constant 0 : i32
    %6 = arith.cmpi slt, %2, %c0_i32_4 : i32
    %7 = arith.xori %5, %6 : i1
    %8 = arith.andi %7, %4 : i1
    %9 = arith.addi %3, %2 : i32
    %10 = arith.select %8, %9, %3 : i32
    %c0_i32_5 = arith.constant 0 : i32
    %c0_i32_6 = arith.constant 0 : i32
    return %10, %c0_i32_5 : i32, i32
  }
  func.func @transform_2(%arg0: i32, %arg1: i32) -> (i32, i32) {
    %c0_i32 = arith.constant 0 : i32
    %c0_i32_0 = arith.constant 0 : i32
    return %arg1, %c0_i32 : i32, i32
  }
  func.func @transform_3(%arg0: i32, %arg1: i32) -> (i32, i32) {
    %c0_i32 = arith.constant 0 : i32
    %c0_i32_0 = arith.constant 0 : i32
    return %arg0, %c0_i32 : i32, i32
  }
}

</mosaic_0001>

<llo_original>
// kernel: tpu_custom_call.1
$region0: #{tpu_custom_call.1}
  #allocation0 [shape = 'u32[]', space=smem, size = 0x4, offset = 0x4, fixed_abs, tag = 'smem constant byte address 0x4 - core index']
  #allocation1 [shape = 'u32[72,128]{1,0:T(1,128)}', space=vmem, size = 0x9000, scoped, tag = 'internal scratch']
  #allocation2 [shape = 'f32[8,1]{1,0:T(8,128)}', space=vmem, size = 0x1000, scoped, tag = 'scratch operand']
  #allocation3 [shape = 'f32[8,1]{1,0:T(8,128)}', space=vmem, size = 0x1000, scoped, tag = 'scratch operand']
  %s0 = inlined_call_operand.hbm [shape: f32[8,32], index: 0, kind: input, shape index: {}]
  %s1 = inlined_call_operand.hbm [shape: f32[8,32], index: 1, kind: input, shape index: {}]
  %s2 = inlined_call_operand.hbm [shape: f32[8,32], index: 2, kind: input, shape index: {}]
  %s3 = inlined_call_operand.hbm [shape: f32[8,128], index: 3, kind: output, shape index: {}]
  %s4 = sld [smem:[#allocation0]]
  $region42: #{tpu_custom_call.1} parent=0
    _
  %s6 = ssub.s32 1, %s4
  %s7 = scalar_select 0, %s6, %s4
  $region1: #{tpu_custom_call.1} parent=0
    #allocation4 [shape = 'u8[4096]{0}', space=vmem, size = 0x1000, scoped, tag = 'input window, operand 0, single buffered']
    #allocation5 [shape = 's32[1]{0}', space=sflag, size = 0x4, scoped, tag = 'scoped memory for tpu_custom_call.1']
    #allocation6 [shape = 's32[1]{0}', space=sflag, size = 0x4, scoped, tag = 'scoped memory for tpu_custom_call.1']
    #allocation7 [shape = 'u8[4096]{0}', space=vmem, size = 0x1000, scoped, tag = 'input window, operand 1, single buffered']
    #allocation8 [shape = 's32[1]{0}', space=sflag, size = 0x4, scoped, tag = 'scoped memory for tpu_custom_call.1']
    #allocation9 [shape = 'u8[4096]{0}', space=vmem, size = 0x1000, scoped, tag = 'input window, operand 2, single buffered']
    #allocation10 [shape = 'u8[4096]{0}', space=vmem, size = 0x1000, scoped, tag = 'output window, operand 0, single buffered']
    %8 = vsyncpa [#allocation5], 0
    %9 = vsyncpa [#allocation8], 0
    %10 = vsyncpa [#allocation6], 0
    // Predicated region
    $region2: #{tpu_custom_call.1} parent=1 // pred_check
      _
    $region3: #{tpu_custom_call.1} parent=1 // pred_check_branch
      %12 = sbr.rel (0) target = $region5
    $region4: #{tpu_custom_call.1} parent=1 // pred_region
      %14 = vsyncadd [#allocation5], 0
      %s16 = sshll.u32 %s0, 4
      %s17 = int_to_ptr.hbm [resolvable:$true] %s16
      %s18 = sshll.u32 [#allocation4], 4
      %s19 = int_to_ptr.vmem [resolvable:$true] %s18
      %21 = dma.hbm_to_vmem [thread:$0]  %s17, 128, %s19, [#allocation5]
    $region5: #{tpu_custom_call.1} parent=1 // pred_fallthru
      _
    // Predicated region
    $region6: #{tpu_custom_call.1} parent=1 // pred_check
      _
    $region7: #{tpu_custom_call.1} parent=1 // pred_check_branch
      %23 = sbr.rel (0) target = $region9
    $region8: #{tpu_custom_call.1} parent=1 // pred_region
      %25 = vsyncadd [#allocation8], 0
      %s27 = sshll.u32 %s1, 4
      %s28 = int_to_ptr.hbm [resolvable:$true] %s27
      %s29 = sshll.u32 [#allocation7], 4
      %s30 = int_to_ptr.vmem [resolvable:$true] %s29
      %32 = dma.hbm_to_vmem [thread:$0]  %s28, 128, %s30, [#allocation8]
    $region9: #{tpu_custom_call.1} parent=1 // pred_fallthru
      _
    // Predicated region
    $region10: #{tpu_custom_call.1} parent=1 // pred_check
      _
    $region11: #{tpu_custom_call.1} parent=1 // pred_check_branch
      %34 = sbr.rel (0) target = $region13
    $region12: #{tpu_custom_call.1} parent=1 // pred_region
      %36 = vsyncadd [#allocation8], 0
      %s38 = sshll.u32 %s2, 4
      %s39 = int_to_ptr.hbm [resolvable:$true] %s38
      %s40 = sshll.u32 [#allocation9], 4
      %s41 = int_to_ptr.vmem [resolvable:$true] %s40
      %43 = dma.hbm_to_vmem [thread:$0]  %s39, 128, %s41, [#allocation8]
    $region13: #{tpu_custom_call.1} parent=1 // pred_fallthru
      _
    // Predicated region
    $region14: #{tpu_custom_call.1} parent=1 // pred_check
      _
    $region15: #{tpu_custom_call.1} parent=1 // pred_check_branch
      %45 = sbr.rel (0) target = $region17
    $region16: #{tpu_custom_call.1} parent=1 // pred_region
      %47 = dma.done [#allocation5], 128
    $region17: #{tpu_custom_call.1} parent=1 // pred_fallthru
      _
    // Predicated region
    $region18: #{tpu_custom_call.1} parent=1 // pred_check
      _
    $region19: #{tpu_custom_call.1} parent=1 // pred_check_branch
      %49 = sbr.rel (0) target = $region21
    $region20: #{tpu_custom_call.1} parent=1 // pred_region
      %51 = dma.done [#allocation8], 128
    $region21: #{tpu_custom_call.1} parent=1 // pred_fallthru
      _
    // Predicated region
    $region22: #{tpu_custom_call.1} parent=1 // pred_check
      _
    $region23: #{tpu_custom_call.1} parent=1 // pred_check_branch
      %53 = sbr.rel (0) target = $region25
    $region24: #{tpu_custom_call.1} parent=1 // pred_region
      %55 = dma.done [#allocation8], 128
    $region25: #{tpu_custom_call.1} parent=1 // pred_fallthru
      _
    %p56 = scmp.eq.s32.totalorder 0, 0
    // Predicated region
    $region26: #{tpu_custom_call.1} parent=1 // pred_check
      %p57 = pneg %p56
    $region27: #{tpu_custom_call.1} parent=1 // pred_check_branch
      %59 = sbr.rel (%p57) target = $region29
    $region28: #{tpu_custom_call.1} parent=1 // pred_region
      %vm60 = vcmask 7168
      %61 = vst.msk [vmem:[#allocation2] sm:$0xff] %vm60, -inf
      %62 = vst.msk [vmem:[#allocation3] sm:$0xff] %vm60, 0.0
    $region29: #{tpu_custom_call.1} parent=1 // pred_fallthru
      _
    %v63 = vld [vmem:[#allocation4] sm:$0xff]
    %v64 = vld [vmem:[#allocation9] sm:$0xff]
    %v65 = vmul.f32 %v63, %v63
    %vm66 = vcmask 261120
    %v67 = vsel %vm66, %v65, 0.0
    %68 = vadd.xlane.f32.xlu0 %v67
    %v69 = vpop.xlane.xlu0 %68
    %v70 = vmax.f32 %v69, 1e-08
    %v71 = vrsqrt.pop %v70
    %v72 = vmul.f32 %v71, %v70
    %v73 = vmul.f32 %v72, %v71
    %v74 = vmul.f32 0.5, %v73
    %v75 = vsub.f32 1.5, %v74
    %v76 = vmul.f32 %v71, %v75
    %vm77 = vweird.f32 %v70
    %vm78 = vweird.f32 %v71
    %vm79 = vmor %vm77, %vm78
    %v80 = vsel %vm79, %v71, %v76
    %v81 = vmul.f32 %v80, 2.0
    %v82 = vmul.f32 %v64, %v64
    %v83 = vsel %vm66, %v82, 0.0
    %84 = vadd.xlane.f32.xlu0 %v83
    %v85 = vpop.xlane.xlu0 %84
    %v86 = vmax.f32 %v85, 1e-08
    %v87 = vrsqrt.pop %v86
    %v88 = vmul.f32 %v87, %v86
    %v89 = vmul.f32 %v88, %v87
    %v90 = vmul.f32 0.5, %v89
    %v91 = vsub.f32 1.5, %v90
    %v92 = vmul.f32 %v87, %v91
    %vm93 = vweird.f32 %v86
    %vm94 = vweird.f32 %v87
    %vm95 = vmor %vm93, %vm94
    %v96 = vsel %vm95, %v87, %v92
    %v97 = vmul.f32 %v63, %v81
    %v98 = vmul.f32 %v64, %v96
    %v100 = vsel %vm66, %v97, 0
    %v103 = vsel %vm66, %v98, 0
    %105 = vmatpush.xpose.msra.mxu0 0.0
    %106 = vmatpush.xpose.msra.mxu0 0.0
    %107 = vmatpush.xpose.msra.mxu0 0.0
    %108 = vmatpush.xpose.msra.mxu0 0.0
    %109 = vmatpush.xpose.msra.mxu0 0.0
    %110 = vmatpush.xpose.msra.mxu0 0.0
    %111 = vmatpush.xpose.msra.mxu0 0.0
    %112 = vmatpush.xpose.msra.mxu0 0.0
    %113 = vmatpush.xpose.msra.mxu0 0.0
    %114 = vmatpush.xpose.msra.mxu0 0.0
    %115 = vmatpush.xpose.msra.mxu0 0.0
    %116 = vmatpush.xpose.msra.mxu0 0.0
    %117 = vmatpush.xpose.msra.mxu0 0.0
    %118 = vmatpush.xpose.msra.mxu0 0.0
    %119 = vmatpush.xpose.msra.mxu0 0.0
    %120 = vmatpush.xpose.msra.mxu0 %v103
    %121 = vmatmul.f32.gmra.mxu0 %v100
    %v122 = vpop.f32.mrf.mxu0
    %v123 = vadd.f32 0.0, %v122
    %124 = vdwg.mxu0
    %v125 = vlaneseq
    %v126 = vand.u32 %v125, 127
    %v127 = vlaneseq
    %v128 = vshrl.u32 %v127, 7
    %s129 = smul.u32 0, 8
    %s130 = smul.u32 0, 8
    %s131 = ssub.s32 %s129, %s130
    %v132 = vstv %s131
    %v133 = vadd.s32 %v128, %v132
    %vm134 = vcmp.eq.s32.totalorder %v126, %v133
    %v135 = vsel %vm134, -1e+30, %v123
    %v136 = vld [vmem:[#allocation2] sm:$0xff]
    %vm137 = vcmask 64512
    %v138 = vsel %vm137, %v135, -inf
    %139 = vmax.xlane.f32.xlu0 %v138
    %v140 = vpop.xlane.xlu0 %139
    %v141 = vmax.f32 %v136, %v140
    %v142 = vsub.f32 %v136, %v141
    %v143 = vmul.f32 %v142, 1.442695
    %v144 = vpow.pop %v143
    %v145 = vld [vmem:[#allocation3] sm:$0xff]
    %v146 = vmul.f32 %v144, %v145
    %148 = vset.pattern.permute.xlu0 0
    %149 = vperm.xlu0 %148, %v141
    %v150 = vpop.permute.xlu0 %149
    %v152 = vsub.f32 %v135, %v150
    %v153 = vmul.f32 %v152, 1.442695
    %v154 = vpow.pop %v153
    %v155 = vsel %vm137, %v154, 0.0
    %156 = vadd.xlane.f32.xlu0 %v155
    %v157 = vpop.xlane.xlu0 %156
    %v158 = vadd.f32 %v146, %v157
    %vm159 = vcmask 7168
    %160 = vst.msk [vmem:[#allocation3] sm:$0xff] %vm159, %v158
    %161 = vst.msk [vmem:[#allocation2] sm:$0xff] %vm159, %v141
    // Predicated region
    $region30: #{tpu_custom_call.1} parent=1 // pred_check
      %p162 = pneg %p56
    $region31: #{tpu_custom_call.1} parent=1 // pred_check_branch
      %164 = sbr.rel (%p162) target = $region33
    $region32: #{tpu_custom_call.1} parent=1 // pred_region
      %v165 = vld [vmem:[#allocation7] sm:$0xff]
      %v166 = vmul.f32 %v165, %v165
      %v167 = vsel %vm66, %v166, 0.0
      %168 = vadd.xlane.f32.xlu0 %v167
      %v169 = vpop.xlane.xlu0 %168
      %v170 = vmax.f32 %v169, 1e-08
      %v171 = vrsqrt.pop %v170
      %v172 = vmul.f32 %v171, %v170
      %v173 = vmul.f32 %v172, %v171
      %v174 = vmul.f32 0.5, %v173
      %v175 = vsub.f32 1.5, %v174
      %v176 = vmul.f32 %v171, %v175
      %vm177 = vweird.f32 %v170
      %vm178 = vweird.f32 %v171
      %vm179 = vmor %vm177, %vm178
      %v180 = vsel %vm179, %v171, %v176
      %v181 = vmul.f32 %v165, %v180
      %v182 = vrot.slane %v181, 4
      %v183 = vmul.f32 %v97, %v182
      %v184 = vsel %vm66, %v183, 0.0
      %185 = vadd.xlane.f32.xlu0 %v184
      %v186 = vpop.xlane.xlu0 %185
      %v187 = vld [vmem:[#allocation2] sm:$0xff]
      %v188 = vld [vmem:[#allocation3] sm:$0xff]
      %v189 = vlog2.pop %v188
      %v190 = vmul.f32 %v189, 0.6931472
      %v191 = vadd.f32 %v187, %v190
      %v192 = vsub.f32 %v191, %v186
      %v193 = vsel %vm159, %v192, 0.0
      %194 = vadd.xlane.f32.xlu0 %v193
      %v195 = vpop.xlane.xlu0 %194
      %v196 = vrot.slane %v195, 4
      %v197 = vadd.f32 %v195, %v196
      %v198 = vrot.slane %v197, 2
      %v199 = vadd.f32 %v197, %v198
      %v200 = vrot.slane %v199, 1
      %v201 = vadd.f32 %v199, %v200
      %s202 = vtos %v201
      %v203 = vstv %s202
      %v204 = vadd.f32 %v203, 0.0
      %205 = vst [vmem:[#allocation10] sm:$0xff] %v204
    $region33: #{tpu_custom_call.1} parent=1 // pred_fallthru
      _
    // Predicated region
    $region34: #{tpu_custom_call.1} parent=1 // pred_check
      _
    $region35: #{tpu_custom_call.1} parent=1 // pred_check_branch
      %207 = sbr.rel (0) target = $region37
    $region36: #{tpu_custom_call.1} parent=1 // pred_region
      %209 = vsyncadd [#allocation6], 0
      %s211 = sshll.u32 [#allocation10], 4
      %s212 = int_to_ptr.vmem [resolvable:$true] %s211
      %s213 = sshll.u32 %s3, 4
      %s214 = int_to_ptr.hbm [resolvable:$true] %s213
      %216 = dma.vmem_to_hbm [thread:$0]  %s212, 128, %s214, [#allocation6]
    $region37: #{tpu_custom_call.1} parent=1 // pred_fallthru
      _
    // Predicated region
    $region38: #{tpu_custom_call.1} parent=1 // pred_check
      _
    $region39: #{tpu_custom_call.1} parent=1 // pred_check_branch
      %218 = sbr.rel (0) target = $region41
    $region40: #{tpu_custom_call.1} parent=1 // pred_region
      %220 = dma.done [#allocation6], 128
    $region41: #{tpu_custom_call.1} parent=1 // pred_fallthru
      _
    %221 = vsyncpa [#allocation5], 1
    %222 = vsyncpa [#allocation8], 1
    %223 = vsyncpa [#allocation6], 1

</llo_original>
